<compile_context>
chip_gen: v7x
topology: tpu7x:2x2x1
jax: 0.10.0
libtpu: 0.0.40
codegen_flags: <defaults>
</compile_context>

<pallas_src>
import inspect

import jax
import jax.numpy as jnp
from jax.experimental import pallas as pl
from jax.experimental.pallas import tpu as pltpu


# --- default pass-through functions (mirror _fun2 / _fun3 in the module) ----
def _fun2(x, y):
    return x


def _fun3(x, y, z):
    return x


# --- helpers -----------------------------------------------------------------
def _round_up(x: int, m: int) -> int:
    return ((x + m - 1) // m) * m


def _cdiv(a: int, b: int) -> int:
    return -(-a // b)


def _num_tensorcores_per_chip() -> int:
    """2 TCs per chip on v7x, 1 on v5e/v6e.  Best-effort device_kind sniff."""
    try:
        kind = jax.devices()[0].device_kind.lower()
    except Exception:
        return 1
    return 2 if "7" in kind else 1


def _pick_col_tile(d: int, block_elems: int, row_align: int) -> int:
    """Feature tile.  Prefer the full row (contiguous DMA) whenever a minimal
    (row_align, d) block fits the f32 element budget, or when d is not a
    multiple of 128 (full extent is then the only legal block width).  Only
    for huge d do we split, picking the largest multiple of 128 dividing d."""
    if d % 128 != 0 or row_align * d <= block_elems:
        return d
    tc = max(128, (block_elems // row_align) // 128 * 128)
    while tc > 128 and d % tc != 0:
        tc -= 128
    return tc  # d % 128 == 0 here, so tc=128 always divides d


# --- Pallas MSE loss (the wrapped 2-arg loss) --------------------------------
def _make_mse_loss(block_bytes: int | None = None):
    """Returns a 2-arg loss(y_hat, y) -> scalar, computed in a Pallas kernel.

    block_bytes: target f32 working-set bytes per input block (per buffer).
    """
    if block_bytes is None:
        # v7x HBM BW is ~2.4x v6e per TC: use bigger blocks to amortize the
        # ~0.35 us per-grid-step overhead.
        block_bytes = (6 << 20) if _num_tensorcores_per_chip() >= 2 else (4 << 20)

    def mse_loss(y_hat: jax.Array, y: jax.Array) -> jax.Array:
        assert y_hat.shape == y.shape and y_hat.ndim == 2
        m, d = y_hat.shape
        n_elems = float(m * d)

        itemsize = jnp.dtype(y_hat.dtype).itemsize
        # sub-32-bit dtypes pack along sublanes -> 16-row (bf16) / 32-row (8-bit) tiles
        row_align = 8 if itemsize >= 4 else (16 if itemsize == 2 else 32)

        # Budget tiles on the f32 working set (in-kernel upcast + diff/sq are f32).
        block_elems = max(row_align * 128, block_bytes // 4)

        tc = _pick_col_tile(d, block_elems, row_align)
        n_col = 1 if tc == d else d // tc

        tm = max(row_align, (block_elems // tc) // row_align * row_align)
        tm = min(tm, _round_up(m, row_align))   # both multiples of row_align
        n_row_total = _cdiv(m, tm)

        # Tiny problem: one block total -> plain XLA mean (free fusion, no launch cost).
        if n_col == 1 and n_row_total == 1:
            return jnp.mean(
                jnp.square(y_hat.astype(jnp.float32) - y.astype(jnp.float32)))

        # v7x only: give the second TensorCore its own contiguous chunk of row
        # tiles when there is no feature-tile parallelism.  Even splits only,
        # so no block index ever points past the array.
        n_split = 1
        if (_num_tensorcores_per_chip() >= 2 and n_col == 1
                and n_row_total >= 2 and n_row_total % 2 == 0):
            n_split = 2
        n_row_per_split = n_row_total // n_split

        # Ragged tail: the last row tile reads past m; mask it in-kernel.
        needs_mask = (m % tm) != 0

        def kernel(m_ref, yhat_ref, y_ref, out_ref):
            i = pl.program_id(2)  # row (reduction) axis is last in the grid

            @pl.when(i == 0)
            def _():
                out_ref[...] = jnp.zeros_like(out_ref)

            diff = yhat_ref[...].astype(jnp.float32) - y_ref[...].astype(jnp.float32)
            if needs_mask:
                s = pl.program_id(1)
                row0 = (s * n_row_per_split + i) * tm
                rows = jax.lax.broadcasted_iota(jnp.int32, (tm, 1), 0) + row0
                diff = jnp.where(rows < m_ref[0], diff, 0.0)  # zero OOB tail rows
            sq = diff * diff
            # Reduce the row tile down to 8 sublanes with pure VPU adds
            # (sublane-split reshape keeps the (8,128) tiling intact).
            out_ref[...] += jnp.sum(sq.reshape(tm // 8, 8, tc), axis=0)

        partial = pl.pallas_call(
            kernel,
            out_shape=jax.ShapeDtypeStruct((n_split * 8, d), jnp.float32),
            grid_spec=pltpu.PrefetchScalarGridSpec(
                num_scalar_prefetch=1,
                # (feature tiles, row split, row tiles) — reduction axis last.
                grid=(n_col, n_split, n_row_per_split),
                in_specs=[
                    pl.BlockSpec((tm, tc),
                                 lambda j, s, i, m_sm: (s * n_row_per_split + i, j)),
                    pl.BlockSpec((tm, tc),
                                 lambda j, s, i, m_sm: (s * n_row_per_split + i, j)),
                ],
                out_specs=pl.BlockSpec((8, tc), lambda j, s, i, m_sm: (s, j)),
            ),
            compiler_params=pltpu.CompilerParams(
                dimension_semantics=("parallel", "parallel", "arbitrary"),
                vmem_limit_bytes=48 << 20,
            ),
        )(jnp.array([m], dtype=jnp.int32), y_hat, y)

        # Tiny epilogue reduce + normalization stays in XLA (free fusion).
        return jnp.sum(partial) * jnp.float32(1.0 / n_elems)

    return mse_loss


# --- LossWrapper: faithful port of the PyTorch module -----------------------
class LossWrapper:
    """Wraps a 2-arg or 3-arg loss function, dispatching on its arity."""

    def __init__(self, function) -> None:
        self.function2 = _fun2
        self.function3 = _fun3
        self.flag3: bool = len(inspect.signature(function).parameters) == 3
        if self.flag3:
            self.function3 = function
        else:
            self.function2 = function

    def __call__(self, y_hat: jax.Array, y: jax.Array, ids: jax.Array) -> jax.Array:
        """Forward data to the wrapped loss function; returns the scalar loss."""
        if self.flag3:
            return self.function3(y_hat, y, ids)
        return self.function2(y_hat, y)

    # alias to match nn.Module.forward naming
    forward = __call__


if __name__ == "__main__":
    key = jax.random.PRNGKey(0)
    k1, k2, k3, k4 = jax.random.split(key, 4)

    def ref_mse(a, b):
        return jnp.mean(jnp.square(a.astype(jnp.float32) - b.astype(jnp.float32)))

    mse = _make_mse_loss()

    # Case 1: tiny f32 inputs -> single-block short-circuit path, 2-arg dispatch.
    y_hat = jax.random.normal(k1, (16, 128), dtype=jnp.float32)
    y = jax.random.normal(k2, (16, 128), dtype=jnp.float32)
    ids = jnp.arange(16, dtype=jnp.int32)  # unused by the 2-arg loss
    wrapper = LossWrapper(mse)
    loss1 = jax.block_until_ready(wrapper(y_hat, y, ids))
    assert jnp.allclose(loss1, ref_mse(y_hat, y), rtol=2e-5, atol=1e-6)

    # Case 2: tiled reduction path (many row tiles), exact row division (no mask).
    mse_small_blk = _make_mse_loss(block_bytes=64 * 1024)
    a2 = jax.random.normal(k3, (256, 1024), dtype=jnp.float32)
    b2 = jax.random.normal(k4, (256, 1024), dtype=jnp.float32)
    loss2 = jax.block_until_ready(LossWrapper(mse_small_blk)(a2, b2, jnp.arange(256)))
    assert jnp.allclose(loss2, ref_mse(a2, b2), rtol=2e-5, atol=1e-6)

    # Case 3: ragged batch (250 rows, tm=16) -> in-kernel row masking, no jnp.pad.
    a3 = jax.random.normal(k1, (250, 1024), dtype=jnp.float32)
    b3 = jax.random.normal(k2, (250, 1024), dtype=jnp.float32)
    loss3 = jax.block_until_ready(LossWrapper(mse_small_blk)(a3, b3, jnp.arange(250)))
    assert jnp.allclose(loss3, ref_mse(a3, b3), rtol=2e-5, atol=1e-6)

    # Case 4: bf16 inputs + ragged batch -> 16-row alignment + masking in the kernel.
    mse_bf16_blk = _make_mse_loss(block_bytes=32 * 1024)
    a4 = jax.random.normal(k3, (100, 256), dtype=jnp.float32).astype(jnp.bfloat16)
    b4 = jax.random.normal(k4, (100, 256), dtype=jnp.float32).astype(jnp.bfloat16)
    loss4 = jax.block_until_ready(LossWrapper(mse_bf16_blk)(a4, b4, jnp.arange(100)))
    assert jnp.allclose(loss4, ref_mse(a4, b4), rtol=1e-4, atol=1e-5)

    # Case 5: tiny block budget forces a feature-dim split (n_col > 1).
    mse_col_split = _make_mse_loss(block_bytes=16 * 1024)
    a5 = jax.random.normal(k1, (64, 1024), dtype=jnp.float32)
    b5 = jax.random.normal(k2, (64, 1024), dtype=jnp.float32)
    loss5 = jax.block_until_ready(LossWrapper(mse_col_split)(a5, b5, jnp.arange(64)))
    assert jnp.allclose(loss5, ref_mse(a5, b5), rtol=2e-5, atol=1e-6)

    # Case 6: non-multiple-of-128 feature dim + bf16 (full-extent column block).
    a6 = jax.random.normal(k3, (50, 96), dtype=jnp.float32).astype(jnp.bfloat16)
    b6 = jax.random.normal(k4, (50, 96), dtype=jnp.float32).astype(jnp.bfloat16)
    loss6 = jax.block_until_ready(wrapper(a6, b6, jnp.arange(50)))
    assert jnp.allclose(loss6, ref_mse(a6, b6), rtol=1e-4, atol=1e-5)

    # Case 7: exercise the 3-arg dispatch path (ids ignored by this loss).
    wrapper3 = LossWrapper(lambda yh, yt, _ids: mse(yh, yt))
    loss7 = jax.block_until_ready(wrapper3(y_hat, y, ids))
    assert jnp.allclose(loss7, ref_mse(y_hat, y), rtol=2e-5, atol=1e-6)

    print("KERNEL_OK")
</pallas_src>

<mosaic_0001>
module attributes {stable_mosaic.version = 11 : i64} {
  func.func @kernel(%arg0: i32, %arg1: i32, %arg2: i32, %arg3: memref<1xi32, #tpu.memory_space<smem>>, %arg4: memref<16x1024xf32, #tpu.memory_space<vmem>>, %arg5: memref<16x1024xf32, #tpu.memory_space<vmem>>, %arg6: memref<8x1024xf32, #tpu.memory_space<vmem>>) attributes {dimension_semantics = [#tpu.dimension_semantics<parallel>, #tpu.dimension_semantics<parallel>, #tpu.dimension_semantics<arbitrary>], iteration_bounds = array<i64: 1, 1, 16>, scalar_prefetch = 1 : i64, scratch_operands = 0 : i64, tpu.core_type = #tpu.core_type<tc>, window_params = [{transform_indices = @transform_0, window_bounds = array<i64: 16, 1024>}, {transform_indices = @transform_1, window_bounds = array<i64: 16, 1024>}, {transform_indices = @transform_2, window_bounds = array<i64: 8, 1024>}]} {
    %c0_i32 = arith.constant 0 : i32
    %0 = arith.cmpi eq, %arg2, %c0_i32 : i32
    %1 = arith.extui %0 : i1 to i32
    %c0_i32_0 = arith.constant 0 : i32
    %2 = arith.cmpi ne, %1, %c0_i32_0 : i32
    scf.if %2 {
      %cst_8 = arith.constant 0.000000e+00 : f32
      %12 = vector.broadcast %cst_8 : f32 to vector<8x1024xf32>
      %c0_9 = arith.constant 0 : index
      %c0_10 = arith.constant 0 : index
      %13 = vector.load %arg6[%c0_9, %c0_10] : memref<8x1024xf32, #tpu.memory_space<vmem>>, vector<8x1024xf32>
      tpu.vector_store %arg6[%c0_9, %c0_10], %12 {strides = array<i32>} : memref<8x1024xf32, #tpu.memory_space<vmem>>, vector<8x1024xf32>,
    } else {
    }
    %c0 = arith.constant 0 : index
    %c0_1 = arith.constant 0 : index
    %3 = vector.load %arg4[%c0, %c0_1] : memref<16x1024xf32, #tpu.memory_space<vmem>>, vector<16x1024xf32>
    %c0_2 = arith.constant 0 : index
    %c0_3 = arith.constant 0 : index
    %4 = vector.load %arg5[%c0_2, %c0_3] : memref<16x1024xf32, #tpu.memory_space<vmem>>, vector<16x1024xf32>
    %5 = arith.subf %3, %4 : vector<16x1024xf32>
    %6 = arith.mulf %5, %5 : vector<16x1024xf32>
    %c0_4 = arith.constant 0 : index
    %c0_5 = arith.constant 0 : index
    %7 = vector.load %arg6[%c0_4, %c0_5] : memref<8x1024xf32, #tpu.memory_space<vmem>>, vector<8x1024xf32>
    %8 = vector.shape_cast %6 : vector<16x1024xf32> to vector<2x8x1024xf32>
    %cst = arith.constant dense<0.000000e+00> : vector<8x1024xf32>
    %9 = vector.multi_reduction <add>, %8, %cst [0] : vector<2x8x1024xf32> to vector<8x1024xf32>
    %10 = arith.addf %7, %9 : vector<8x1024xf32>
    %c0_6 = arith.constant 0 : index
    %c0_7 = arith.constant 0 : index
    %11 = vector.load %arg6[%c0_6, %c0_7] : memref<8x1024xf32, #tpu.memory_space<vmem>>, vector<8x1024xf32>
    tpu.vector_store %arg6[%c0_6, %c0_7], %10 {strides = array<i32>} : memref<8x1024xf32, #tpu.memory_space<vmem>>, vector<8x1024xf32>,
    return
  }
  func.func @transform_0(%arg0: i32, %arg1: i32, %arg2: i32, %arg3: memref<1xi32, #tpu.memory_space<smem>>) -> (i32, i32) {
    %c16_i32 = arith.constant 16 : i32
    %0 = arith.muli %arg1, %c16_i32 : i32
    %1 = arith.addi %0, %arg2 : i32
    %c0_i32 = arith.constant 0 : i32
    return %1, %arg0 : i32, i32
  }
  func.func @transform_1(%arg0: i32, %arg1: i32, %arg2: i32, %arg3: memref<1xi32, #tpu.memory_space<smem>>) -> (i32, i32) {
    %c16_i32 = arith.constant 16 : i32
    %0 = arith.muli %arg1, %c16_i32 : i32
    %1 = arith.addi %0, %arg2 : i32
    %c0_i32 = arith.constant 0 : i32
    return %1, %arg0 : i32, i32
  }
  func.func @transform_2(%arg0: i32, %arg1: i32, %arg2: i32, %arg3: memref<1xi32, #tpu.memory_space<smem>>) -> (i32, i32) {
    %c0_i32 = arith.constant 0 : i32
    return %arg1, %arg0 : i32, i32
  }
}

</mosaic_0001>

<llo_original>
// kernel: tpu_custom_call.1
$region0: #{tpu_custom_call.1}
  #allocation0 [shape = 'u32[]', space=smem, size = 0x4, offset = 0x4, fixed_abs, tag = 'smem constant byte address 0x4 - core index']
  #allocation1 [shape = 'u32[144,128]{1,0:T(1,128)}', space=vmem, size = 0x12000, scoped, tag = 'internal scratch']
  #allocation2 [shape = 's32[1]{0}', space=sflag, size = 0x4, scoped, tag = 'scoped memory for tpu_custom_call.1']
  #allocation3 [shape = 's32[1]{0:T(128)S(6)}', space=smem, size = 0x200, scoped, tag = 'prefetched SMEM operand 0']
  %s0 = inlined_call_operand.<no memory space> [shape: s32[1], index: 0, kind: input, shape index: {}]
  %s1 = inlined_call_operand.hbm [shape: f32[256,1024], index: 1, kind: input, shape index: {}]
  %s2 = inlined_call_operand.hbm [shape: f32[256,1024], index: 2, kind: input, shape index: {}]
  %s3 = inlined_call_operand.hbm [shape: f32[8,1024], index: 3, kind: output, shape index: {}]
  %s4 = sld [smem:[#allocation0]]
  $region53: #{tpu_custom_call.1} parent=0
    _
  %s6 = ssub.s32 1, %s4
  %s7 = scalar_select 0, %s6, %s4
  %8 = sst [smem:[#allocation3]] %s0
  $region1: #{tpu_custom_call.1} parent=0
    #allocation4 [shape = 'u8[131072]{0}', space=vmem, size = 0x20000, scoped, tag = 'input window, operand 1']
    #allocation5 [shape = 's32[2]{0}', space=sflag, size = 0x8, scoped, tag = 'scoped memory for tpu_custom_call.1']
    #allocation6 [shape = 's32[2]{0}', space=sflag, size = 0x8, scoped, tag = 'scoped memory for tpu_custom_call.1']
    #allocation7 [shape = 'u8[131072]{0}', space=vmem, size = 0x20000, scoped, tag = 'input window, operand 2']
    #allocation8 [shape = 's32[2]{0}', space=sflag, size = 0x8, scoped, tag = 'scoped memory for tpu_custom_call.1']
    #allocation9 [shape = 'u8[32768]{0}', space=vmem, size = 0x8000, scoped, tag = 'output window, operand 0, single buffered']
    %9 = vsyncpa [#allocation5], 0
    %s10 = scalar_lea.sflag [#allocation5], 1
    %11 = vsyncpa %s10, 0
    %12 = vsyncpa [#allocation8], 0
    %s13 = scalar_lea.sflag [#allocation8], 1
    %14 = vsyncpa %s13, 0
    %15 = vsyncpa [#allocation6], 0
    loop: start=0, step=1, limit=18
    $region2: #{tpu_custom_call.1} parent=1 // loop_pre_header
      _
    $region3: #{tpu_custom_call.1} parent=1 // loop_header
      %s17 = sphi 0, %s21
      %p18 = scmp.ge.s32.totalorder %s17, 18
      %s24 = sphi 0, %s43
      %s25 = sphi 0, %s39
      %s26 = sphi 0, %s35
      %s27 = sphi 0, %s24
      %s28 = sphi 0, %s25
      %s29 = sphi 0, %s26
      %s30 = sphi 0, %s27
      %s31 = sphi 0, %s28
      %s32 = sphi 0, %s29
      %s52 = sphi 0, %s54
      %s55 = sphi 0, %s52
      %s56 = sphi 0, %s55
      %s72 = sphi 0, %s56
      %s84 = sphi 0, %s86
      %s87 = sphi 0, %s84
      %s88 = sphi 0, %s87
      %s104 = sphi 0, %s88
      %s112 = sphi 0, %s114
      %s115 = sphi 0, %s112
      %s116 = sphi 0, %s115
      %s132 = sphi 0, %s116
    $region4: #{tpu_custom_call.1} parent=1 // loop_header_branch
      %20 = sbr.rel (%p18) target = $region8
    $region5: #{tpu_custom_call.1} parent=1 // loop_body
      %s22 = ssub.s32 %s17, 1
      %s23 = ssub.s32 %s17, 2
      %s33 = sadd.s32 1, %s26
      %p34 = scmp.ge.s32.totalorder %s33, 16
      %s35 = scalar_select %p34, 0, %s33
      %s36 = sadd.s32 1, %s25
      %s37 = scalar_select %p34, %s36, %s25
      %p38 = scmp.ge.s32.totalorder %s37, 1
      %s39 = scalar_select %p38, 0, %s37
      %s40 = sadd.s32 1, %s24
      %s41 = scalar_select %p38, %s40, %s24
      %p42 = scmp.ge.s32.totalorder %s41, 1
      %s43 = scalar_select %p42, 0, %s41
      %s44 = smul.u32 %s25, 16
      %s45 = sadd.s32 %s44, %s26
      %s46 = smul.u32 %s39, 16
      %s47 = sadd.s32 %s46, %s35
      %s48 = ssub.s32 %s45, %s47
      %s49 = ssub.s32 %s24, %s43
      %s50 = sor.u32 %s48, %s49
      %p51 = scmp.eq.s32.totalorder %s50, 0
      %s53 = sadd.s32 %s52, 1
      %s54 = scalar_select %p51, %s52, %s53
      %p57 = pneg %p51
      %p58 = scmp.eq.s32.totalorder %s17, 15
      %p59 = por %p57, %p58
      %p60 = scmp.ne.s32.totalorder %s52, %s55
      %p61 = scmp.eq.s32.totalorder %s17, 0
      %p62 = por %p60, %p61
      %p63 = scmp.ne.s32.totalorder %s52, %s55
      %p64 = scmp.eq.s32.totalorder %s22, 15
      %p65 = por %p63, %p64
      %p66 = scmp.ne.s32.totalorder %s55, %s56
      %p67 = scmp.eq.s32.totalorder %s22, 0
      %p68 = por %p66, %p67
      %p69 = scmp.ne.s32.totalorder %s55, %s56
      %p70 = scmp.eq.s32.totalorder %s23, 15
      %p71 = por %p69, %p70
      %p73 = scmp.ne.s32.totalorder %s56, %s72
      %p74 = scmp.eq.s32.totalorder %s23, 0
      %p75 = por %p73, %p74
      %s76 = smul.u32 %s25, 16
      %s77 = sadd.s32 %s76, %s26
      %s78 = smul.u32 %s39, 16
      %s79 = sadd.s32 %s78, %s35
      %s80 = ssub.s32 %s77, %s79
      %s81 = ssub.s32 %s24, %s43
      %s82 = sor.u32 %s80, %s81
      %p83 = scmp.eq.s32.totalorder %s82, 0
      %s85 = sadd.s32 %s84, 1
      %s86 = scalar_select %p83, %s84, %s85
      %p89 = pneg %p83
      %p90 = scmp.eq.s32.totalorder %s17, 15
      %p91 = por %p89, %p90
      %p92 = scmp.ne.s32.totalorder %s84, %s87
      %p93 = scmp.eq.s32.totalorder %s17, 0
      %p94 = por %p92, %p93
      %p95 = scmp.ne.s32.totalorder %s84, %s87
      %p96 = scmp.eq.s32.totalorder %s22, 15
      %p97 = por %p95, %p96
      %p98 = scmp.ne.s32.totalorder %s87, %s88
      %p99 = scmp.eq.s32.totalorder %s22, 0
      %p100 = por %p98, %p99
      %p101 = scmp.ne.s32.totalorder %s87, %s88
      %p102 = scmp.eq.s32.totalorder %s23, 15
      %p103 = por %p101, %p102
      %p105 = scmp.ne.s32.totalorder %s88, %s104
      %p106 = scmp.eq.s32.totalorder %s23, 0
      %p107 = por %p105, %p106
      %s108 = ssub.s32 %s25, %s39
      %s109 = ssub.s32 %s24, %s43
      %s110 = sor.u32 %s108, %s109
      %p111 = scmp.eq.s32.totalorder %s110, 0
      %s113 = sadd.s32 %s112, 1
      %s114 = scalar_select %p111, %s112, %s113
      %p117 = pneg %p111
      %p118 = scmp.eq.s32.totalorder %s17, 15
      %p119 = por %p117, %p118
      %p120 = scmp.ne.s32.totalorder %s112, %s115
      %p121 = scmp.eq.s32.totalorder %s17, 0
      %p122 = por %p120, %p121
      %p123 = scmp.ne.s32.totalorder %s112, %s115
      %p124 = scmp.eq.s32.totalorder %s22, 15
      %p125 = por %p123, %p124
      %p126 = scmp.ne.s32.totalorder %s115, %s116
      %p127 = scmp.eq.s32.totalorder %s22, 0
      %p128 = por %p126, %p127
      %p129 = scmp.ne.s32.totalorder %s115, %s116
      %p130 = scmp.eq.s32.totalorder %s23, 15
      %p131 = por %p129, %p130
      %p133 = scmp.ne.s32.totalorder %s116, %s132
      %p134 = scmp.eq.s32.totalorder %s23, 0
      %p135 = por %p133, %p134
      %p136 = scmp.le.s32.totalorder 1, %s17
      %p137 = scmp.lt.s32.totalorder %s17, 17
      %p138 = pnand %p136, %p137
      %p139 = pneg %p138
      // Predicated region
      $region9: #{tpu_custom_call.1} parent=5 // pred_check
        _
      $region10: #{tpu_custom_call.1} parent=5 // pred_check_branch
        %141 = sbr.rel (%p138) target = $region12
      $region11: #{tpu_custom_call.1} parent=5 // pred_region
        %s142 = ssub.s32 %s17, 1
      $region12: #{tpu_custom_call.1} parent=5 // pred_fallthru
        _
      %p143 = scmp.lt.s32.totalorder %s17, 16
      // Predicated region
      $region13: #{tpu_custom_call.1} parent=5 // pred_check
        %p144 = pneg %p143
      $region14: #{tpu_custom_call.1} parent=5 // pred_check_branch
        %146 = sbr.rel (%p144) target = $region16
      $region15: #{tpu_custom_call.1} parent=5 // pred_region
        // Predicated region
        $region17: #{tpu_custom_call.1} parent=15 // pred_check
          %p147 = pneg %p62
        $region18: #{tpu_custom_call.1} parent=15 // pred_check_branch
          %149 = sbr.rel (%p147) target = $region20
        $region19: #{tpu_custom_call.1} parent=15 // pred_region
          %s150 = sand.u32 %s52, 1
          %s151 = scalar_lea.sflag [#allocation5], %s150
          %s152 = sand.u32 %s52, 1
          %s153 = smul.addr %s152, 128
          %s154 = scalar_lea.vmem [#allocation4], %s153
          %s155 = smul.u32 %s25, 16
          %s156 = sadd.s32 %s155, %s26
          %s157 = smul.u32 2, %s156
          %s158 = smul.u32 8, %s24
          %s160 = ssub.s32 2048, 2048
          %161 = vsyncadd %s151, %s160
          %s162 = smul.addr %s157, 8
          %s163 = sadd.s32 %s158, %s162
          %s164 = smul.addr %s163, 128
          %s165 = scalar_lea.hbm %s1, %s164
          %s166 = sshll.u32 %s154, 4
          %s167 = int_to_ptr.vmem [resolvable:$true] %s166
          %172 = dma.hbm_to_vmem [thread:$0]  %s165, 2048, %s167, %s151, 1024, 1024, 64
        $region20: #{tpu_custom_call.1} parent=15 // pred_fallthru
          _
        // Predicated region
        $region21: #{tpu_custom_call.1} parent=15 // pred_check
          %p173 = pneg %p94
        $region22: #{tpu_custom_call.1} parent=15 // pred_check_branch
          %175 = sbr.rel (%p173) target = $region24
        $region23: #{tpu_custom_call.1} parent=15 // pred_region
          %s176 = sand.u32 %s84, 1
          %s177 = scalar_lea.sflag [#allocation8], %s176
          %s178 = sand.u32 %s84, 1
          %s179 = smul.addr %s178, 128
          %s180 = scalar_lea.vmem [#allocation7], %s179
          %s181 = smul.u32 %s25, 16
          %s182 = sadd.s32 %s181, %s26
          %s183 = smul.u32 2, %s182
          %s184 = smul.u32 8, %s24
          %s186 = ssub.s32 2048, 2048
          %187 = vsyncadd %s177, %s186
          %s188 = smul.addr %s183, 8
          %s189 = sadd.s32 %s184, %s188
          %s190 = smul.addr %s189, 128
          %s191 = scalar_lea.hbm %s2, %s190
          %s192 = sshll.u32 %s180, 4
          %s193 = int_to_ptr.vmem [resolvable:$true] %s192
          %198 = dma.hbm_to_vmem [thread:$0]  %s191, 2048, %s193, %s177, 1024, 1024, 64
        $region24: #{tpu_custom_call.1} parent=15 // pred_fallthru
          _
      $region16: #{tpu_custom_call.1} parent=5 // pred_fallthru
        _
      %p199 = scmp.le.s32.totalorder 1, %s17
      %p200 = scmp.lt.s32.totalorder %s17, 17
      %p201 = pnand %p199, %p200
      %p202 = pneg %p201
      // Predicated region
      $region25: #{tpu_custom_call.1} parent=5 // pred_check
        _
      $region26: #{tpu_custom_call.1} parent=5 // pred_check_branch
        %204 = sbr.rel (%p201) target = $region28
      $region27: #{tpu_custom_call.1} parent=5 // pred_region
        %s205 = ssub.s32 %s17, 1
        %s206 = sand.u32 %s55, 1
        %s207 = scalar_lea.sflag [#allocation5], %s206
        %s208 = sand.u32 %s55, 1
        %s209 = smul.addr %s208, 128
        %s210 = scalar_lea.vmem [#allocation4], %s209
        // Predicated region
        $region29: #{tpu_custom_call.1} parent=27 // pred_check
          %p211 = pneg %p68
        $region30: #{tpu_custom_call.1} parent=27 // pred_check_branch
          %213 = sbr.rel (%p211) target = $region32
        $region31: #{tpu_custom_call.1} parent=27 // pred_region
          %214 = dma.done %s207, 2048
        $region32: #{tpu_custom_call.1} parent=27 // pred_fallthru
          _
        %s215 = sand.u32 %s87, 1
        %s216 = scalar_lea.sflag [#allocation8], %s215
        %s217 = sand.u32 %s87, 1
        %s218 = smul.addr %s217, 128
        %s219 = scalar_lea.vmem [#allocation7], %s218
        // Predicated region
        $region33: #{tpu_custom_call.1} parent=27 // pred_check
          %p220 = pneg %p100
        $region34: #{tpu_custom_call.1} parent=27 // pred_check_branch
          %222 = sbr.rel (%p220) target = $region36
        $region35: #{tpu_custom_call.1} parent=27 // pred_region
          %223 = dma.done %s216, 2048
        $region36: #{tpu_custom_call.1} parent=27 // pred_fallthru
          _
        %s224 = sand.u32 %s55, 1
        %s225 = scalar_lea.sflag [#allocation5], %s224
        %s226 = sand.u32 %s55, 1
        %s227 = smul.addr %s226, 128
        %s228 = scalar_lea.vmem [#allocation4], %s227
        %p229 = pneg %p68
        %p230 = pneg %p65
        %s231 = sand.u32 %s87, 1
        %s232 = scalar_lea.sflag [#allocation8], %s231
        %s233 = sand.u32 %s87, 1
        %s234 = smul.addr %s233, 128
        %s235 = scalar_lea.vmem [#allocation7], %s234
        %p236 = pneg %p100
        %p237 = pneg %p97
        %p238 = pneg %p128
        %p239 = pneg %p125
        %s240 = smul.u32 %s28, 16
        %s241 = sadd.s32 %s240, %s29
        %s242 = smul.u32 2, %s241
        %s243 = smul.u32 8, %s27
        %s244 = smul.u32 %s28, 16
        %s245 = sadd.s32 %s244, %s29
        %s246 = smul.u32 2, %s245
        %s247 = smul.u32 8, %s27
        %s248 = smul.u32 8, %s27
        %p249 = scmp.eq.s32.totalorder %s29, 0
        // Predicated region
        $region37: #{tpu_custom_call.1} parent=27 // pred_check
          %p250 = pneg %p249
        $region38: #{tpu_custom_call.1} parent=27 // pred_check_branch
          %252 = sbr.rel (%p250) target = $region40
        $region39: #{tpu_custom_call.1} parent=27 // pred_region
          %253 = vst [vmem:[#allocation9] sm:$0xff] 0.0
          %254 = vst [vmem:[#allocation9 + $0x8] sm:$0xff] 0.0
          %255 = vst [vmem:[#allocation9 + $0x10] sm:$0xff] 0.0
          %256 = vst [vmem:[#allocation9 + $0x18] sm:$0xff] 0.0
          %257 = vst [vmem:[#allocation9 + $0x20] sm:$0xff] 0.0
          %258 = vst [vmem:[#allocation9 + $0x28] sm:$0xff] 0.0
          %259 = vst [vmem:[#allocation9 + $0x30] sm:$0xff] 0.0
          %260 = vst [vmem:[#allocation9 + $0x38] sm:$0xff] 0.0
        $region40: #{tpu_custom_call.1} parent=27 // pred_fallthru
          _
        %v261 = vld [vmem:[%s210] sm:$0xff]
        %v262 = vld [vmem:[%s210 + $0x8] sm:$0xff]
        %v263 = vld [vmem:[%s210 + $0x10] sm:$0xff]
        %v264 = vld [vmem:[%s210 + $0x18] sm:$0xff]
        %v265 = vld [vmem:[%s210 + $0x20] sm:$0xff]
        %v266 = vld [vmem:[%s210 + $0x28] sm:$0xff]
        %v267 = vld [vmem:[%s210 + $0x30] sm:$0xff]
        %v268 = vld [vmem:[%s210 + $0x38] sm:$0xff]
        %v269 = vld [vmem:[%s210 + $0x40] sm:$0xff]
        %v270 = vld [vmem:[%s210 + $0x48] sm:$0xff]
        %v271 = vld [vmem:[%s210 + $0x50] sm:$0xff]
        %v272 = vld [vmem:[%s210 + $0x58] sm:$0xff]
        %v273 = vld [vmem:[%s210 + $0x60] sm:$0xff]
        %v274 = vld [vmem:[%s210 + $0x68] sm:$0xff]
        %v275 = vld [vmem:[%s210 + $0x70] sm:$0xff]
        %v276 = vld [vmem:[%s210 + $0x78] sm:$0xff]
        %v277 = vld [vmem:[%s219] sm:$0xff]
        %v278 = vld [vmem:[%s219 + $0x8] sm:$0xff]
        %v279 = vld [vmem:[%s219 + $0x10] sm:$0xff]
        %v280 = vld [vmem:[%s219 + $0x18] sm:$0xff]
        %v281 = vld [vmem:[%s219 + $0x20] sm:$0xff]
        %v282 = vld [vmem:[%s219 + $0x28] sm:$0xff]
        %v283 = vld [vmem:[%s219 + $0x30] sm:$0xff]
        %v284 = vld [vmem:[%s219 + $0x38] sm:$0xff]
        %v285 = vld [vmem:[%s219 + $0x40] sm:$0xff]
        %v286 = vld [vmem:[%s219 + $0x48] sm:$0xff]
        %v287 = vld [vmem:[%s219 + $0x50] sm:$0xff]
        %v288 = vld [vmem:[%s219 + $0x58] sm:$0xff]
        %v289 = vld [vmem:[%s219 + $0x60] sm:$0xff]
        %v290 = vld [vmem:[%s219 + $0x68] sm:$0xff]
        %v291 = vld [vmem:[%s219 + $0x70] sm:$0xff]
        %v292 = vld [vmem:[%s219 + $0x78] sm:$0xff]
        %v293 = vsub.f32 %v261, %v277
        %v294 = vsub.f32 %v262, %v278
        %v295 = vsub.f32 %v263, %v279
        %v296 = vsub.f32 %v264, %v280
        %v297 = vsub.f32 %v265, %v281
        %v298 = vsub.f32 %v266, %v282
        %v299 = vsub.f32 %v267, %v283
        %v300 = vsub.f32 %v268, %v284
        %v301 = vsub.f32 %v269, %v285
        %v302 = vsub.f32 %v270, %v286
        %v303 = vsub.f32 %v271, %v287
        %v304 = vsub.f32 %v272, %v288
        %v305 = vsub.f32 %v273, %v289
        %v306 = vsub.f32 %v274, %v290
        %v307 = vsub.f32 %v275, %v291
        %v308 = vsub.f32 %v276, %v292
        %v309 = vmul.f32 %v293, %v293
        %v310 = vmul.f32 %v294, %v294
        %v311 = vmul.f32 %v295, %v295
        %v312 = vmul.f32 %v296, %v296
        %v313 = vmul.f32 %v297, %v297
        %v314 = vmul.f32 %v298, %v298
        %v315 = vmul.f32 %v299, %v299
        %v316 = vmul.f32 %v300, %v300
        %v317 = vmul.f32 %v301, %v301
        %v318 = vmul.f32 %v302, %v302
        %v319 = vmul.f32 %v303, %v303
        %v320 = vmul.f32 %v304, %v304
        %v321 = vmul.f32 %v305, %v305
        %v322 = vmul.f32 %v306, %v306
        %v323 = vmul.f32 %v307, %v307
        %v324 = vmul.f32 %v308, %v308
        %v325 = vld [vmem:[#allocation9] sm:$0xff]
        %v326 = vld [vmem:[#allocation9 + $0x8] sm:$0xff]
        %v327 = vld [vmem:[#allocation9 + $0x10] sm:$0xff]
        %v328 = vld [vmem:[#allocation9 + $0x18] sm:$0xff]
        %v329 = vld [vmem:[#allocation9 + $0x20] sm:$0xff]
        %v330 = vld [vmem:[#allocation9 + $0x28] sm:$0xff]
        %v331 = vld [vmem:[#allocation9 + $0x30] sm:$0xff]
        %v332 = vld [vmem:[#allocation9 + $0x38] sm:$0xff]
        %v333 = vadd.f32 %v309, %v317
        %v334 = vadd.f32 %v310, %v318
        %v335 = vadd.f32 %v311, %v319
        %v336 = vadd.f32 %v312, %v320
        %v337 = vadd.f32 %v313, %v321
        %v338 = vadd.f32 %v314, %v322
        %v339 = vadd.f32 %v315, %v323
        %v340 = vadd.f32 %v316, %v324
        %v341 = vadd.f32 %v325, %v333
        %v342 = vadd.f32 %v326, %v334
        %v343 = vadd.f32 %v327, %v335
        %v344 = vadd.f32 %v328, %v336
        %v345 = vadd.f32 %v329, %v337
        %v346 = vadd.f32 %v330, %v338
        %v347 = vadd.f32 %v331, %v339
        %v348 = vadd.f32 %v332, %v340
        %349 = vst [vmem:[#allocation9] sm:$0xff] %v341
        %350 = vst [vmem:[#allocation9 + $0x8] sm:$0xff] %v342
        %351 = vst [vmem:[#allocation9 + $0x10] sm:$0xff] %v343
        %352 = vst [vmem:[#allocation9 + $0x18] sm:$0xff] %v344
        %353 = vst [vmem:[#allocation9 + $0x20] sm:$0xff] %v345
        %354 = vst [vmem:[#allocation9 + $0x28] sm:$0xff] %v346
        %355 = vst [vmem:[#allocation9 + $0x30] sm:$0xff] %v347
        %356 = vst [vmem:[#allocation9 + $0x38] sm:$0xff] %v348
        // Predicated region
        $region41: #{tpu_custom_call.1} parent=27 // pred_check
          %p357 = pneg %p125
        $region42: #{tpu_custom_call.1} parent=27 // pred_check_branch
          %359 = sbr.rel (%p357) target = $region44
        $region43: #{tpu_custom_call.1} parent=27 // pred_region
          %s360 = smul.u32 8, %s27
          %s362 = ssub.s32 1024, 1024
          %363 = vsyncadd [#allocation6], %s362
          %s364 = smul.addr %s28, 8
          %s365 = sadd.s32 %s360, %s364
          %s366 = smul.addr %s365, 128
          %s367 = scalar_lea.hbm %s3, %s366
          %s369 = sshll.u32 [#allocation9], 4
          %s370 = int_to_ptr.vmem [resolvable:$true] %s369
          %372 = dma.vmem_to_hbm [thread:$0]  %s370, 1024, %s367, [#allocation6]
        $region44: #{tpu_custom_call.1} parent=27 // pred_fallthru
          _
        // Predicated region
        $region45: #{tpu_custom_call.1} parent=27 // pred_check
          %p373 = pneg %p125
        $region46: #{tpu_custom_call.1} parent=27 // pred_check_branch
          %375 = sbr.rel (%p373) target = $region48
        $region47: #{tpu_custom_call.1} parent=27 // pred_region
          %376 = dma.done [#allocation6], 1024
        $region48: #{tpu_custom_call.1} parent=27 // pred_fallthru
          _
      $region28: #{tpu_custom_call.1} parent=5 // pred_fallthru
        _
      %p377 = scmp.le.s32.totalorder 2, %s17
      // Predicated region
      $region49: #{tpu_custom_call.1} parent=5 // pred_check
        %p378 = pneg %p377
      $region50: #{tpu_custom_call.1} parent=5 // pred_check_branch
        %380 = sbr.rel (%p378) target = $region52
      $region51: #{tpu_custom_call.1} parent=5 // pred_region
        %s381 = ssub.s32 %s17, 2
      $region52: #{tpu_custom_call.1} parent=5 // pred_fallthru
        _
    $region6: #{tpu_custom_call.1} parent=1 // loop_footer
      %s21 = sadd.s32 1, %s17
    $region7: #{tpu_custom_call.1} parent=1 // loop_footer_branch
      %16 = sbr.rel target = $region3
    $region8: #{tpu_custom_call.1} parent=1 // loop_exit
      _
    %382 = vsyncpa [#allocation5], 1
    %s383 = scalar_lea.sflag [#allocation5], 1
    %384 = vsyncpa %s383, 1
    %385 = vsyncpa [#allocation8], 1
    %s386 = scalar_lea.sflag [#allocation8], 1
    %387 = vsyncpa %s386, 1
    %388 = vsyncpa [#allocation6], 1
    %s389 = scalar_lea.sflag [#allocation6], 1
    %390 = vsyncpa %s389, 1

</llo_original>
